<compile_context>
chip_gen: v6e
topology: v6e:2x2x1
jax: 0.10.0
libtpu: 0.0.40
codegen_flags: <defaults>
</compile_context>

<pallas_src>
import functools

import jax
import jax.numpy as jnp
import numpy as np
from jax.experimental import pallas as pl
from jax.experimental.pallas import tpu as pltpu

_LANE = 128


def _round_up(v, m):
    return ((v + m - 1) // m) * m


# --------------------------------------------------------------------------
# Kernel bodies
# --------------------------------------------------------------------------
def _breg_math(x_ref, y_ref, w, need_grads):
    """Shared per-tile math. Returns (loss, p, onehot); p/onehot None if unused.

    NOTE: when B % tb != 0 the ragged last tile runs this math on padded rows;
    every op here is strictly per-row (no cross-row accumulation), so garbage
    in dead rows can never contaminate valid rows' outputs.
    """
    x = x_ref[...].astype(jnp.float32)            # (TB, D)
    y = y_ref[...].astype(jnp.float32)            # (TB, C), C = D + 1
    TB, D = x.shape
    C = y.shape[-1]

    zx = w * x                                    # extra class logit is implicitly 0

    # logsumexp over the D+1 logits [zx, 0] (single exp pass, reused below).
    m = jnp.maximum(jnp.max(zx, axis=-1, keepdims=True), 0.0)        # (TB, 1)
    e = jnp.exp(zx - m)                                              # (TB, D)
    sumexp = jnp.sum(e, axis=-1, keepdims=True) + jnp.exp(-m)        # (TB, 1)

    # target = argmax(y, -1), first-occurrence tie-break (matches torch.argmax).
    y_max = jnp.max(y, axis=-1, keepdims=True)
    col_c = jax.lax.broadcasted_iota(jnp.int32, (TB, C), 1)
    t = jnp.min(jnp.where(y == y_max, col_c, C), axis=-1, keepdims=True)  # (TB, 1)

    # One-hot mask over the first D classes, reused for z[target] and d_loss.
    col_d = jax.lax.broadcasted_iota(jnp.int32, (TB, D), 1)
    tmask = col_d == t                                               # (TB, D) bool
    z_t = jnp.sum(jnp.where(tmask, zx, 0.0), axis=-1, keepdims=True)  # 0 if t == D

    loss = m + jnp.log(sumexp) - z_t                                 # (TB, 1)
    if not need_grads:
        return loss, None, None

    # Softmax over the D+1 logits, truncated to the first D entries.
    # EUP approx reciprocal + two Newton steps (full f32 accuracy, tiny shape).
    inv = pl.reciprocal(sumexp, approx=True)
    inv = inv * (2.0 - sumexp * inv)
    inv = inv * (2.0 - sumexp * inv)
    p = e * inv                                                      # (TB, D)
    onehot = tmask.astype(jnp.float32)
    return loss, p, onehot


def _xe_bregman_loss_kernel(x_ref, y_ref, loss_ref, *, w):
    loss, _, _ = _breg_math(x_ref, y_ref, w, need_grads=False)
    loss_ref[...] = loss


def _xe_bregman_full_kernel(x_ref, y_ref, eye_ref, loss_ref, dloss_ref,
                            ddloss_ref, *, w, flat):
    loss, p, onehot = _breg_math(x_ref, y_ref, w, need_grads=True)
    loss_ref[...] = loss
    dloss_ref[...] = w * (p - onehot)                                # (TB, D)

    TB, D = p.shape
    # Hessian: w^2 * p_i * (delta_ij - p_j); w^2 folded into the small (TB, D)
    # factor.  eye is a resident (D, D) input (constant index_map -> loaded
    # once, not re-built every sequential grid step).
    w2p = (w * w) * p                                                # (TB, D)
    dd = w2p[:, :, None] * (eye_ref[...][None, :, :] - p[:, None, :])
    if flat:
        # Lane-dense store path: the relayout copy of the reshape stays inside
        # VMEM, while the HBM writeback (the real bottleneck) becomes a dense,
        # unmasked (TB, D*D) block instead of a lane-padded (TB, D, D) one.
        ddloss_ref[...] = dd.reshape(TB, D * D)
    else:
        ddloss_ref[...] = dd                                         # (TB, D, D)


# --------------------------------------------------------------------------
# Tiling / VMEM sizing (lane-padding and generation aware)
# --------------------------------------------------------------------------
def _vmem_usable_bytes():
    """Per-core VMEM budget with headroom for compiler-internal scratch."""
    try:
        cap = int(pltpu.get_tpu_info().vmem_capacity_bytes)
    except Exception:
        cap = 64 << 20                 # conservative fallback: v7x per-TC VMEM
    # ~80% of physical, never closer than 12 MiB to the ceiling:
    # v7x (64 MiB) -> ~51 MiB; v5e/v6e (128 MiB) -> ~102 MiB.
    return min(int(cap * 0.8), cap - (12 << 20))


def _row_bytes(D, C, with_hessian, flat_hessian):
    """Per-batch-row VMEM bytes of one block set, including lane padding."""
    b = _round_up(D, _LANE) * 4               # x
    b += _round_up(C, _LANE) * 4              # y
    b += _LANE * 4                            # loss (last dim 1 -> one lane group)
    if with_hessian:
        b += _round_up(D, _LANE) * 4          # d_loss
        b += D * _round_up(D, _LANE) * 4      # (TB, D, D) block / intermediate
        if flat_hessian:
            # flat (TB, D*D) output block; the padded (TB, D, D) term above then
            # accounts (conservatively, doubled) for the reshape's VMEM copy.
            b += _round_up(D * D, _LANE) * 4
    return b


def _pick_batch_tile(B, row_bytes, fixed_bytes, usable):
    """Largest multiple-of-8 batch tile whose double-buffered blocks fit."""
    margin = 2 << 20                          # semaphores / small scratch
    avail = usable - margin - fixed_bytes
    tb = max(avail, 0) // (2 * row_bytes)     # x2: BlockSpec double-buffers
    if tb >= B or B <= 8:
        return B
    if tb < 8:
        # TODO(synk): for very large D add a second grid axis over the Hessian's
        # trailing dim (recompute p per j-tile, it is cheap) instead of
        # shrinking tb below 8 -- needed to fit v7x's 64 MiB VMEM at D ~ 1024.
        return 8
    return int((tb // 8) * 8)


def _vmem_limit_bytes(tb, row_bytes, fixed_bytes, usable):
    need = 2 * tb * row_bytes + fixed_bytes + (4 << 20)
    return int(min(max(need, 16 << 20), usable))


# --------------------------------------------------------------------------
# Wrapper
# --------------------------------------------------------------------------
def xe_autograd_bregman(x, y, w=1.0, only_loss=False, batch_tile=None):
    """Pallas TPU implementation of XEAutogradBregman.forward."""
    B, D = x.shape
    C = y.shape[-1]
    assert C == D + 1, "y must have D+1 classes (module appends one zero logit)"

    # TODO(synk): optionally accept integer targets to drop the (B, C) y stream
    # entirely in the input-DMA-bound only_loss path.

    with_hessian = not only_loss
    flat = with_hessian and (D % _LANE != 0)   # flatten Hessian when lane-sparse
    usable = _vmem_usable_bytes()
    eye_bytes = 2 * D * _round_up(D, _LANE) * 4 if with_hessian else 0
    row_bytes = _row_bytes(D, C, with_hessian, flat)

    tb = _pick_batch_tile(B, row_bytes, eye_bytes, usable)
    if batch_tile is not None:
        tb = min(int(batch_tile), B)
    grid = (pl.cdiv(B, tb),)

    in_specs = [
        pl.BlockSpec((tb, D), lambda b: (b, 0)),
        pl.BlockSpec((tb, C), lambda b: (b, 0)),
    ]
    # "parallel" lets v7x's two TensorCores split the batch grid (no-op on the
    # single-core v5e/v6e).  If profiling shows one TC idle on v7x, switch this
    # axis to pltpu.CORE_PARALLEL.
    compiler_params = pltpu.CompilerParams(
        dimension_semantics=("parallel",),
        vmem_limit_bytes=_vmem_limit_bytes(tb, row_bytes, eye_bytes, usable),
    )

    if only_loss:
        loss = pl.pallas_call(
            functools.partial(_xe_bregman_loss_kernel, w=float(w)),
            out_shape=jax.ShapeDtypeStruct((B, 1), jnp.float32),
            grid=grid,
            in_specs=in_specs,
            out_specs=pl.BlockSpec((tb, 1), lambda b: (b, 0)),
            compiler_params=compiler_params,
        )(x, y)
        return loss[:, 0]

    eye = jnp.eye(D, dtype=jnp.float32)
    in_specs.append(pl.BlockSpec((D, D), lambda b: (0, 0)))  # resident identity

    dd_shape = (B, D * D) if flat else (B, D, D)
    dd_spec = (pl.BlockSpec((tb, D * D), lambda b: (b, 0)) if flat
               else pl.BlockSpec((tb, D, D), lambda b: (b, 0, 0)))

    loss, d_loss, dd_loss = pl.pallas_call(
        functools.partial(_xe_bregman_full_kernel, w=float(w), flat=flat),
        out_shape=(
            jax.ShapeDtypeStruct((B, 1), jnp.float32),
            jax.ShapeDtypeStruct((B, D), jnp.float32),
            jax.ShapeDtypeStruct(dd_shape, jnp.float32),
        ),
        grid=grid,
        in_specs=in_specs,
        out_specs=(
            pl.BlockSpec((tb, 1), lambda b: (b, 0)),
            pl.BlockSpec((tb, D), lambda b: (b, 0)),
            dd_spec,
        ),
        compiler_params=compiler_params,
    )(x, y, eye)
    if flat:
        dd_loss = dd_loss.reshape(B, D, D)     # contiguous -> free
    return loss[:, 0], d_loss, dd_loss


# --------------------------------------------------------------------------
# Pure-JAX reference mirroring the PyTorch module's math
# --------------------------------------------------------------------------
def _reference(x, y, w=1.0):
    D = x.shape[-1]
    z = jnp.concatenate([w * x, jnp.zeros_like(x[..., :1])], axis=-1)
    log_s = jax.nn.log_softmax(z, axis=-1)
    t = jnp.argmax(y, axis=-1)
    loss = -jnp.take_along_axis(log_s, t[:, None], axis=-1)[:, 0]
    p = jax.nn.softmax(z, axis=-1)[:, :D]
    onehot = jax.nn.one_hot(t, D, dtype=x.dtype)
    d = w * (p - onehot)
    dd = (w * w) * (jnp.eye(D, dtype=x.dtype) * p[:, :, None]
                    - p[:, :, None] * p[:, None, :])
    return loss, d, dd


if __name__ == "__main__":
    B, D = 16, 32          # x: (B, D) logits; one implicit extra class -> C = D + 1
    C = D + 1
    w = 1.0                # module default __init__(w=1.0)

    key = jax.random.PRNGKey(0)
    kx, ky = jax.random.split(key)
    x = jax.random.normal(kx, (B, D), dtype=jnp.float32)
    targets = jax.random.randint(ky, (B,), 0, C)
    y = jax.nn.one_hot(targets, C, dtype=jnp.float32)   # (B, C)

    # Full path; batch_tile=8 forces a 2-step batch grid so tiling is exercised.
    loss, d_loss, dd_loss = xe_autograd_bregman(x, y, w=w, batch_tile=8)
    jax.block_until_ready((loss, d_loss, dd_loss))

    # only_loss fast path (never computes or writes the gradient/Hessian).
    loss_only = xe_autograd_bregman(x, y, w=w, only_loss=True)
    jax.block_until_ready(loss_only)

    # Sanity check against the pure-JAX reference.
    ref_loss, ref_d, ref_dd = _reference(x, y, w=w)
    np.testing.assert_allclose(np.asarray(loss), np.asarray(ref_loss), atol=1e-5, rtol=1e-5)
    np.testing.assert_allclose(np.asarray(loss_only), np.asarray(ref_loss), atol=1e-5, rtol=1e-5)
    np.testing.assert_allclose(np.asarray(d_loss), np.asarray(ref_d), atol=1e-5, rtol=1e-5)
    np.testing.assert_allclose(np.asarray(dd_loss), np.asarray(ref_dd), atol=1e-5, rtol=1e-5)

    print("KERNEL_OK")
</pallas_src>

<mosaic_0001>
module attributes {stable_mosaic.version = 11 : i64} {
  func.func @_xe_bregman_full_kernel(%arg0: i32, %arg1: memref<8x32xf32, #tpu.memory_space<vmem>>, %arg2: memref<8x33xf32, #tpu.memory_space<vmem>>, %arg3: memref<32x32xf32, #tpu.memory_space<vmem>>, %arg4: memref<8x1xf32, #tpu.memory_space<vmem>>, %arg5: memref<8x32xf32, #tpu.memory_space<vmem>>, %arg6: memref<8x1024xf32, #tpu.memory_space<vmem>>) attributes {dimension_semantics = [#tpu.dimension_semantics<parallel>], iteration_bounds = array<i64: 2>, scalar_prefetch = 0 : i64, scratch_operands = 0 : i64, tpu.core_type = #tpu.core_type<tc>, window_params = [{transform_indices = @transform_0, window_bounds = array<i64: 8, 32>}, {transform_indices = @transform_1, window_bounds = array<i64: 8, 33>}, {pipeline_mode = #tpu.pipeline_mode<synchronous>, transform_indices = @transform_2, window_bounds = array<i64: 32, 32>}, {transform_indices = @transform_3, window_bounds = array<i64: 8, 1>}, {transform_indices = @transform_4, window_bounds = array<i64: 8, 32>}, {transform_indices = @transform_5, window_bounds = array<i64: 8, 1024>}]} {
    %c0 = arith.constant 0 : index
    %c0_0 = arith.constant 0 : index
    %0 = vector.load %arg1[%c0, %c0_0] : memref<8x32xf32, #tpu.memory_space<vmem>>, vector<8x32xf32>
    %c0_1 = arith.constant 0 : index
    %c0_2 = arith.constant 0 : index
    %1 = vector.load %arg2[%c0_1, %c0_2] : memref<8x33xf32, #tpu.memory_space<vmem>>, vector<8x33xf32>
    %cst = arith.constant 1.000000e+00 : f32
    %2 = vector.broadcast %cst : f32 to vector<8x32xf32>
    %3 = arith.mulf %2, %0 : vector<8x32xf32>
    %cst_3 = arith.constant dense<0xFF800000> : vector<8xf32>
    %4 = vector.multi_reduction <maximumf>, %3, %cst_3 [1] : vector<8x32xf32> to vector<8xf32>
    %5 = vector.shape_cast %4 : vector<8xf32> to vector<8x1xf32>
    %cst_4 = arith.constant 0.000000e+00 : f32
    %6 = vector.broadcast %cst_4 : f32 to vector<8x1xf32>
    %7 = arith.maximumf %5, %6 : vector<8x1xf32>
    %8 = vector.broadcast %7 : vector<8x1xf32> to vector<8x32xf32>
    %9 = arith.subf %3, %8 : vector<8x32xf32>
    %10 = math.exp %9 : vector<8x32xf32>
    %cst_5 = arith.constant dense<0.000000e+00> : vector<8xf32>
    %11 = vector.multi_reduction <add>, %10, %cst_5 [1] : vector<8x32xf32> to vector<8xf32>
    %12 = vector.shape_cast %11 : vector<8xf32> to vector<8x1xf32>
    %cst_6 = arith.constant 0.000000e+00 : f32
    %13 = vector.broadcast %cst_6 : f32 to vector<8x1xf32>
    %14 = arith.subf %13, %7 : vector<8x1xf32>
    %15 = math.exp %14 : vector<8x1xf32>
    %16 = arith.addf %12, %15 : vector<8x1xf32>
    %cst_7 = arith.constant dense<0xFF800000> : vector<8xf32>
    %17 = vector.multi_reduction <maximumf>, %1, %cst_7 [1] : vector<8x33xf32> to vector<8xf32>
    %18 = vector.shape_cast %17 : vector<8xf32> to vector<8x1xf32>
    %19 = tpu.iota {dimensions = array<i32: 1>} : vector<8x33xi32>
    %20 = vector.broadcast %18 : vector<8x1xf32> to vector<8x33xf32>
    %21 = arith.cmpf oeq, %1, %20 : vector<8x33xf32>
    %c33_i32 = arith.constant 33 : i32
    %22 = vector.broadcast %c33_i32 : i32 to vector<8x33xi32>
    %23 = arith.select %21, %19, %22 : vector<8x33xi1>, vector<8x33xi32>
    %cst_8 = arith.constant dense<2147483647> : vector<8xi32>
    %24 = vector.multi_reduction <minsi>, %23, %cst_8 [1] : vector<8x33xi32> to vector<8xi32>
    %25 = vector.shape_cast %24 : vector<8xi32> to vector<8x1xi32>
    %26 = tpu.iota {dimensions = array<i32: 1>} : vector<8x32xi32>
    %27 = vector.broadcast %25 : vector<8x1xi32> to vector<8x32xi32>
    %28 = arith.cmpi eq, %26, %27 : vector<8x32xi32>
    %cst_9 = arith.constant 0.000000e+00 : f32
    %29 = vector.broadcast %cst_9 : f32 to vector<8x32xf32>
    %30 = arith.select %28, %3, %29 : vector<8x32xi1>, vector<8x32xf32>
    %cst_10 = arith.constant dense<0.000000e+00> : vector<8xf32>
    %31 = vector.multi_reduction <add>, %30, %cst_10 [1] : vector<8x32xf32> to vector<8xf32>
    %32 = vector.shape_cast %31 : vector<8xf32> to vector<8x1xf32>
    %33 = math.log %16 : vector<8x1xf32>
    %34 = arith.addf %7, %33 : vector<8x1xf32>
    %35 = arith.subf %34, %32 : vector<8x1xf32>
    %36 = tpu.reciprocal %16 {approx = true} : vector<8x1xf32> -> vector<8x1xf32>
    %37 = arith.mulf %16, %36 : vector<8x1xf32>
    %cst_11 = arith.constant 2.000000e+00 : f32
    %38 = vector.broadcast %cst_11 : f32 to vector<8x1xf32>
    %39 = arith.subf %38, %37 : vector<8x1xf32>
    %40 = arith.mulf %36, %39 : vector<8x1xf32>
    %41 = arith.mulf %16, %40 : vector<8x1xf32>
    %cst_12 = arith.constant 2.000000e+00 : f32
    %42 = vector.broadcast %cst_12 : f32 to vector<8x1xf32>
    %43 = arith.subf %42, %41 : vector<8x1xf32>
    %44 = arith.mulf %40, %43 : vector<8x1xf32>
    %45 = vector.broadcast %44 : vector<8x1xf32> to vector<8x32xf32>
    %46 = arith.mulf %10, %45 : vector<8x32xf32>
    %47 = arith.extui %28 : vector<8x32xi1> to vector<8x32xi32>
    %48 = arith.sitofp %47 : vector<8x32xi32> to vector<8x32xf32>
    %c0_13 = arith.constant 0 : index
    %c0_14 = arith.constant 0 : index
    %49 = vector.load %arg4[%c0_13, %c0_14] : memref<8x1xf32, #tpu.memory_space<vmem>>, vector<8x1xf32>
    tpu.vector_store %arg4[%c0_13, %c0_14], %35 {strides = array<i32>} : memref<8x1xf32, #tpu.memory_space<vmem>>, vector<8x1xf32>,
    %50 = arith.subf %46, %48 : vector<8x32xf32>
    %cst_15 = arith.constant 1.000000e+00 : f32
    %51 = vector.broadcast %cst_15 : f32 to vector<8x32xf32>
    %52 = arith.mulf %51, %50 : vector<8x32xf32>
    %c0_16 = arith.constant 0 : index
    %c0_17 = arith.constant 0 : index
    %53 = vector.load %arg5[%c0_16, %c0_17] : memref<8x32xf32, #tpu.memory_space<vmem>>, vector<8x32xf32>
    tpu.vector_store %arg5[%c0_16, %c0_17], %52 {strides = array<i32>} : memref<8x32xf32, #tpu.memory_space<vmem>>, vector<8x32xf32>,
    %cst_18 = arith.constant 1.000000e+00 : f32
    %54 = vector.broadcast %cst_18 : f32 to vector<8x32xf32>
    %55 = arith.mulf %54, %46 : vector<8x32xf32>
    %56 = vector.shape_cast %55 : vector<8x32xf32> to vector<8x32x1xf32>
    %c0_19 = arith.constant 0 : index
    %c0_20 = arith.constant 0 : index
    %57 = vector.load %arg3[%c0_19, %c0_20] : memref<32x32xf32, #tpu.memory_space<vmem>>, vector<32x32xf32>
    %58 = vector.shape_cast %57 : vector<32x32xf32> to vector<1x32x32xf32>
    %59 = vector.shape_cast %46 : vector<8x32xf32> to vector<8x1x32xf32>
    %60 = vector.broadcast %58 : vector<1x32x32xf32> to vector<8x32x32xf32>
    %61 = vector.broadcast %59 : vector<8x1x32xf32> to vector<8x32x32xf32>
    %62 = arith.subf %60, %61 : vector<8x32x32xf32>
    %63 = vector.broadcast %56 : vector<8x32x1xf32> to vector<8x32x32xf32>
    %64 = arith.mulf %63, %62 : vector<8x32x32xf32>
    %65 = vector.shape_cast %64 : vector<8x32x32xf32> to vector<8x1024xf32>
    %c0_21 = arith.constant 0 : index
    %c0_22 = arith.constant 0 : index
    %66 = vector.load %arg6[%c0_21, %c0_22] : memref<8x1024xf32, #tpu.memory_space<vmem>>, vector<8x1024xf32>
    tpu.vector_store %arg6[%c0_21, %c0_22], %65 {strides = array<i32>} : memref<8x1024xf32, #tpu.memory_space<vmem>>, vector<8x1024xf32>,
    return
  }
  func.func @transform_0(%arg0: i32) -> (i32, i32) {
    %c0_i32 = arith.constant 0 : i32
    %c0_i32_0 = arith.constant 0 : i32
    return %arg0, %c0_i32 : i32, i32
  }
  func.func @transform_1(%arg0: i32) -> (i32, i32) {
    %c0_i32 = arith.constant 0 : i32
    %c0_i32_0 = arith.constant 0 : i32
    return %arg0, %c0_i32 : i32, i32
  }
  func.func @transform_2(%arg0: i32) -> (i32, i32) {
    %c0_i32 = arith.constant 0 : i32
    %c0_i32_0 = arith.constant 0 : i32
    %c0_i32_1 = arith.constant 0 : i32
    return %c0_i32, %c0_i32_0 : i32, i32
  }
  func.func @transform_3(%arg0: i32) -> (i32, i32) {
    %c0_i32 = arith.constant 0 : i32
    %c0_i32_0 = arith.constant 0 : i32
    return %arg0, %c0_i32 : i32, i32
  }
  func.func @transform_4(%arg0: i32) -> (i32, i32) {
    %c0_i32 = arith.constant 0 : i32
    %c0_i32_0 = arith.constant 0 : i32
    return %arg0, %c0_i32 : i32, i32
  }
  func.func @transform_5(%arg0: i32) -> (i32, i32) {
    %c0_i32 = arith.constant 0 : i32
    %c0_i32_0 = arith.constant 0 : i32
    return %arg0, %c0_i32 : i32, i32
  }
}

</mosaic_0001>

<llo_original>
// kernel: tpu_custom_call.1
$region0: #{tpu_custom_call.1}
  #allocation0 [shape = 'u32[]', space=smem, size = 0x4, offset = 0x4, fixed_abs, tag = 'smem constant byte address 0x4 - core index']
  #allocation1 [shape = 'u32[144,128]{1,0:T(1,128)}', space=vmem, size = 0x12000, scoped, tag = 'internal scratch']
  %s0 = inlined_call_operand.hbm [shape: f32[16,32], index: 0, kind: input, shape index: {}]
  %s1 = inlined_call_operand.hbm [shape: f32[16,33], index: 1, kind: input, shape index: {}]
  %s2 = inlined_call_operand.hbm [shape: f32[32,32], index: 2, kind: input, shape index: {}]
  %s3 = inlined_call_operand.vmem [shape: f32[16,1], index: 3, kind: output, shape index: {0}]
  %s4 = inlined_call_operand.hbm [shape: f32[16,32], index: 4, kind: output, shape index: {1}]
  %s5 = inlined_call_operand.hbm [shape: f32[16,1024], index: 5, kind: output, shape index: {2}]
  %6 = xla_tuple %s3, %s4, %s5
  %s7 = sld [smem:[#allocation0]]
  $region73: #{tpu_custom_call.1} parent=0
    _
  %s9 = ssub.s32 1, %s7
  %s10 = scalar_select 0, %s9, %s7
  $region1: #{tpu_custom_call.1} parent=0
    #allocation2 [shape = 'u8[8192]{0}', space=vmem, size = 0x2000, scoped, tag = 'input window, operand 0']
    #allocation3 [shape = 's32[2]{0}', space=sflag, size = 0x8, scoped, tag = 'scoped memory for tpu_custom_call.1']
    #allocation4 [shape = 's32[2]{0}', space=sflag, size = 0x8, scoped, tag = 'scoped memory for tpu_custom_call.1']
    #allocation5 [shape = 'u8[8192]{0}', space=vmem, size = 0x2000, scoped, tag = 'input window, operand 1']
    #allocation6 [shape = 's32[2]{0}', space=sflag, size = 0x8, scoped, tag = 'scoped memory for tpu_custom_call.1']
    #allocation7 [shape = 'u8[16384]{0}', space=vmem, size = 0x4000, scoped, tag = 'input window, operand 2, single buffered']
    #allocation8 [shape = 'u8[8192]{0}', space=vmem, size = 0x2000, scoped, tag = 'output window, operand 1']
    #allocation9 [shape = 'u8[65536]{0}', space=vmem, size = 0x10000, scoped, tag = 'output window, operand 2']
    #allocation10 [shape = 's32[2]{0}', space=sflag, size = 0x8, scoped, tag = 'scoped memory for tpu_custom_call.1']
    %11 = vsyncpa [#allocation3], 0
    %s12 = scalar_lea.sflag [#allocation3], 1
    %13 = vsyncpa %s12, 0
    %14 = vsyncpa [#allocation6], 0
    %s15 = scalar_lea.sflag [#allocation6], 1
    %16 = vsyncpa %s15, 0
    %17 = vsyncpa [#allocation4], 0
    %s18 = scalar_lea.sflag [#allocation4], 1
    %19 = vsyncpa %s18, 0
    %20 = vsyncpa [#allocation10], 0
    %s21 = scalar_lea.sflag [#allocation10], 1
    %22 = vsyncpa %s21, 0
    loop: start=0, step=1, limit=4
    $region2: #{tpu_custom_call.1} parent=1 // loop_pre_header
      _
    $region3: #{tpu_custom_call.1} parent=1 // loop_header
      %s24 = sphi 0, %s28
      %p25 = scmp.ge.s32.totalorder %s24, 4
      %s34 = sphi 0, %s36
      %s37 = sphi 0, %s34
      %s38 = sphi 0, %s37
      %s54 = sphi 0, %s38
      %s60 = sphi 0, %s62
      %s63 = sphi 0, %s60
      %s64 = sphi 0, %s63
      %s80 = sphi 0, %s64
      %s84 = sphi 0, %s84
      %s86 = sphi 0, %s84
      %s87 = sphi 0, %s86
      %s101 = sphi 0, %s87
      %s107 = sphi 0, %s109
      %s110 = sphi 0, %s107
      %s111 = sphi 0, %s110
      %s127 = sphi 0, %s111
      %s133 = sphi 0, %s135
      %s136 = sphi 0, %s133
      %s137 = sphi 0, %s136
      %s153 = sphi 0, %s137
      %s159 = sphi 0, %s161
      %s162 = sphi 0, %s159
      %s163 = sphi 0, %s162
      %s179 = sphi 0, %s163
    $region4: #{tpu_custom_call.1} parent=1 // loop_header_branch
      %27 = sbr.rel (%p25) target = $region8
    $region5: #{tpu_custom_call.1} parent=1 // loop_body
      %s29 = ssub.s32 %s24, 1
      %s30 = ssub.s32 %s24, 2
      %s31 = sadd.s32 %s24, 1
      %s32 = ssub.s32 %s24, %s31
      %p33 = scmp.eq.s32.totalorder %s32, 0
      %s35 = sadd.s32 %s34, 1
      %s36 = scalar_select %p33, %s34, %s35
      %p39 = pneg %p33
      %p40 = scmp.eq.s32.totalorder %s24, 1
      %p41 = por %p39, %p40
      %p42 = scmp.ne.s32.totalorder %s34, %s37
      %p43 = scmp.eq.s32.totalorder %s24, 0
      %p44 = por %p42, %p43
      %p45 = scmp.ne.s32.totalorder %s34, %s37
      %p46 = scmp.eq.s32.totalorder %s29, 1
      %p47 = por %p45, %p46
      %p48 = scmp.ne.s32.totalorder %s37, %s38
      %p49 = scmp.eq.s32.totalorder %s29, 0
      %p50 = por %p48, %p49
      %p51 = scmp.ne.s32.totalorder %s37, %s38
      %p52 = scmp.eq.s32.totalorder %s30, 1
      %p53 = por %p51, %p52
      %p55 = scmp.ne.s32.totalorder %s38, %s54
      %p56 = scmp.eq.s32.totalorder %s30, 0
      %p57 = por %p55, %p56
      %s58 = ssub.s32 %s24, %s31
      %p59 = scmp.eq.s32.totalorder %s58, 0
      %s61 = sadd.s32 %s60, 1
      %s62 = scalar_select %p59, %s60, %s61
      %p65 = pneg %p59
      %p66 = scmp.eq.s32.totalorder %s24, 1
      %p67 = por %p65, %p66
      %p68 = scmp.ne.s32.totalorder %s60, %s63
      %p69 = scmp.eq.s32.totalorder %s24, 0
      %p70 = por %p68, %p69
      %p71 = scmp.ne.s32.totalorder %s60, %s63
      %p72 = scmp.eq.s32.totalorder %s29, 1
      %p73 = por %p71, %p72
      %p74 = scmp.ne.s32.totalorder %s63, %s64
      %p75 = scmp.eq.s32.totalorder %s29, 0
      %p76 = por %p74, %p75
      %p77 = scmp.ne.s32.totalorder %s63, %s64
      %p78 = scmp.eq.s32.totalorder %s30, 1
      %p79 = por %p77, %p78
      %p81 = scmp.ne.s32.totalorder %s64, %s80
      %p82 = scmp.eq.s32.totalorder %s30, 0
      %p83 = por %p81, %p82
      %s85 = sadd.s32 %s84, 1
      %p88 = scmp.eq.s32.totalorder %s24, 1
      %p89 = scmp.ne.s32.totalorder %s84, %s86
      %p90 = scmp.eq.s32.totalorder %s24, 0
      %p91 = por %p89, %p90
      %p92 = scmp.ne.s32.totalorder %s84, %s86
      %p93 = scmp.eq.s32.totalorder %s29, 1
      %p94 = por %p92, %p93
      %p95 = scmp.ne.s32.totalorder %s86, %s87
      %p96 = scmp.eq.s32.totalorder %s29, 0
      %p97 = por %p95, %p96
      %p98 = scmp.ne.s32.totalorder %s86, %s87
      %p99 = scmp.eq.s32.totalorder %s30, 1
      %p100 = por %p98, %p99
      %p102 = scmp.ne.s32.totalorder %s87, %s101
      %p103 = scmp.eq.s32.totalorder %s30, 0
      %p104 = por %p102, %p103
      %s105 = ssub.s32 %s24, %s31
      %p106 = scmp.eq.s32.totalorder %s105, 0
      %s108 = sadd.s32 %s107, 1
      %s109 = scalar_select %p106, %s107, %s108
      %p112 = pneg %p106
      %p113 = scmp.eq.s32.totalorder %s24, 1
      %p114 = por %p112, %p113
      %p115 = scmp.ne.s32.totalorder %s107, %s110
      %p116 = scmp.eq.s32.totalorder %s24, 0
      %p117 = por %p115, %p116
      %p118 = scmp.ne.s32.totalorder %s107, %s110
      %p119 = scmp.eq.s32.totalorder %s29, 1
      %p120 = por %p118, %p119
      %p121 = scmp.ne.s32.totalorder %s110, %s111
      %p122 = scmp.eq.s32.totalorder %s29, 0
      %p123 = por %p121, %p122
      %p124 = scmp.ne.s32.totalorder %s110, %s111
      %p125 = scmp.eq.s32.totalorder %s30, 1
      %p126 = por %p124, %p125
      %p128 = scmp.ne.s32.totalorder %s111, %s127
      %p129 = scmp.eq.s32.totalorder %s30, 0
      %p130 = por %p128, %p129
      %s131 = ssub.s32 %s24, %s31
      %p132 = scmp.eq.s32.totalorder %s131, 0
      %s134 = sadd.s32 %s133, 1
      %s135 = scalar_select %p132, %s133, %s134
      %p138 = pneg %p132
      %p139 = scmp.eq.s32.totalorder %s24, 1
      %p140 = por %p138, %p139
      %p141 = scmp.ne.s32.totalorder %s133, %s136
      %p142 = scmp.eq.s32.totalorder %s24, 0
      %p143 = por %p141, %p142
      %p144 = scmp.ne.s32.totalorder %s133, %s136
      %p145 = scmp.eq.s32.totalorder %s29, 1
      %p146 = por %p144, %p145
      %p147 = scmp.ne.s32.totalorder %s136, %s137
      %p148 = scmp.eq.s32.totalorder %s29, 0
      %p149 = por %p147, %p148
      %p150 = scmp.ne.s32.totalorder %s136, %s137
      %p151 = scmp.eq.s32.totalorder %s30, 1
      %p152 = por %p150, %p151
      %p154 = scmp.ne.s32.totalorder %s137, %s153
      %p155 = scmp.eq.s32.totalorder %s30, 0
      %p156 = por %p154, %p155
      %s157 = ssub.s32 %s24, %s31
      %p158 = scmp.eq.s32.totalorder %s157, 0
      %s160 = sadd.s32 %s159, 1
      %s161 = scalar_select %p158, %s159, %s160
      %p164 = pneg %p158
      %p165 = scmp.eq.s32.totalorder %s24, 1
      %p166 = por %p164, %p165
      %p167 = scmp.ne.s32.totalorder %s159, %s162
      %p168 = scmp.eq.s32.totalorder %s24, 0
      %p169 = por %p167, %p168
      %p170 = scmp.ne.s32.totalorder %s159, %s162
      %p171 = scmp.eq.s32.totalorder %s29, 1
      %p172 = por %p170, %p171
      %p173 = scmp.ne.s32.totalorder %s162, %s163
      %p174 = scmp.eq.s32.totalorder %s29, 0
      %p175 = por %p173, %p174
      %p176 = scmp.ne.s32.totalorder %s162, %s163
      %p177 = scmp.eq.s32.totalorder %s30, 1
      %p178 = por %p176, %p177
      %p180 = scmp.ne.s32.totalorder %s163, %s179
      %p181 = scmp.eq.s32.totalorder %s30, 0
      %p182 = por %p180, %p181
      %p183 = scmp.le.s32.totalorder 1, %s24
      %p184 = scmp.lt.s32.totalorder %s24, 3
      %p185 = pnand %p183, %p184
      %p186 = pneg %p185
      // Predicated region
      $region9: #{tpu_custom_call.1} parent=5 // pred_check
        _
      $region10: #{tpu_custom_call.1} parent=5 // pred_check_branch
        %188 = sbr.rel (%p185) target = $region12
      $region11: #{tpu_custom_call.1} parent=5 // pred_region
        %s189 = ssub.s32 %s24, 1
        // Predicated region
        $region13: #{tpu_custom_call.1} parent=11 // pred_check
          %p190 = pneg %p97
        $region14: #{tpu_custom_call.1} parent=11 // pred_check_branch
          %192 = sbr.rel (%p190) target = $region16
        $region15: #{tpu_custom_call.1} parent=11 // pred_region
          %s194 = ssub.s32 512, 512
          %195 = vsyncadd [#allocation6], %s194
          %s196 = sshll.u32 [#allocation7], 4
          %s197 = int_to_ptr.vmem [resolvable:$true] %s196
          %202 = dma.hbm_to_vmem [thread:$0]  %s2, 512, %s197, [#allocation6], 128, 128, 8
        $region16: #{tpu_custom_call.1} parent=11 // pred_fallthru
          _
      $region12: #{tpu_custom_call.1} parent=5 // pred_fallthru
        _
      %p203 = scmp.lt.s32.totalorder %s24, 2
      // Predicated region
      $region17: #{tpu_custom_call.1} parent=5 // pred_check
        %p204 = pneg %p203
      $region18: #{tpu_custom_call.1} parent=5 // pred_check_branch
        %206 = sbr.rel (%p204) target = $region20
      $region19: #{tpu_custom_call.1} parent=5 // pred_region
        // Predicated region
        $region21: #{tpu_custom_call.1} parent=19 // pred_check
          %p207 = pneg %p44
        $region22: #{tpu_custom_call.1} parent=19 // pred_check_branch
          %209 = sbr.rel (%p207) target = $region24
        $region23: #{tpu_custom_call.1} parent=19 // pred_region
          %s210 = sand.u32 %s34, 1
          %s211 = scalar_lea.sflag [#allocation3], %s210
          %s212 = sand.u32 %s34, 1
          %s213 = smul.addr %s212, 8
          %s214 = scalar_lea.vmem [#allocation2], %s213
          %s216 = ssub.s32 128, 128
          %217 = vsyncadd %s211, %s216
          %s218 = smul.addr %s24, 128
          %s219 = scalar_lea.hbm %s0, %s218
          %s221 = sshll.u32 %s214, 4
          %s222 = int_to_ptr.vmem [resolvable:$true] %s221
          %224 = dma.hbm_to_vmem [thread:$0]  %s219, 128, %s222, %s211
        $region24: #{tpu_custom_call.1} parent=19 // pred_fallthru
          _
        // Predicated region
        $region25: #{tpu_custom_call.1} parent=19 // pred_check
          %p225 = pneg %p70
        $region26: #{tpu_custom_call.1} parent=19 // pred_check_branch
          %227 = sbr.rel (%p225) target = $region28
        $region27: #{tpu_custom_call.1} parent=19 // pred_region
          %s228 = sand.u32 %s24, 1
          %s229 = scalar_lea.sflag [#allocation6], %s228
          %s230 = sand.u32 %s60, 1
          %s231 = smul.addr %s230, 8
          %s232 = scalar_lea.vmem [#allocation5], %s231
          %s234 = ssub.s32 128, 128
          %235 = vsyncadd %s229, %s234
          %s236 = smul.addr %s24, 128
          %s237 = scalar_lea.hbm %s1, %s236
          %s239 = sshll.u32 %s232, 4
          %s240 = int_to_ptr.vmem [resolvable:$true] %s239
          %242 = dma.hbm_to_vmem [thread:$0]  %s237, 128, %s240, %s229
        $region28: #{tpu_custom_call.1} parent=19 // pred_fallthru
          _
      $region20: #{tpu_custom_call.1} parent=5 // pred_fallthru
        _
      %p243 = scmp.le.s32.totalorder 1, %s24
      %p244 = scmp.lt.s32.totalorder %s24, 3
      %p245 = pnand %p243, %p244
      %p246 = pneg %p245
      // Predicated region
      $region29: #{tpu_custom_call.1} parent=5 // pred_check
        _
      $region30: #{tpu_custom_call.1} parent=5 // pred_check_branch
        %248 = sbr.rel (%p245) target = $region32
      $region31: #{tpu_custom_call.1} parent=5 // pred_region
        %s249 = ssub.s32 %s24, 1
        %s250 = sand.u32 %s37, 1
        %s251 = scalar_lea.sflag [#allocation3], %s250
        %s252 = sand.u32 %s37, 1
        %s253 = smul.addr %s252, 8
        %s254 = scalar_lea.vmem [#allocation2], %s253
        // Predicated region
        $region33: #{tpu_custom_call.1} parent=31 // pred_check
          %p255 = pneg %p50
        $region34: #{tpu_custom_call.1} parent=31 // pred_check_branch
          %257 = sbr.rel (%p255) target = $region36
        $region35: #{tpu_custom_call.1} parent=31 // pred_region
          %258 = dma.done %s251, 128
        $region36: #{tpu_custom_call.1} parent=31 // pred_fallthru
          _
        %s259 = sand.u32 %s29, 1
        %s260 = scalar_lea.sflag [#allocation6], %s259
        %s261 = sand.u32 %s63, 1
        %s262 = smul.addr %s261, 8
        %s263 = scalar_lea.vmem [#allocation5], %s262
        // Predicated region
        $region37: #{tpu_custom_call.1} parent=31 // pred_check
          %p264 = pneg %p76
        $region38: #{tpu_custom_call.1} parent=31 // pred_check_branch
          %266 = sbr.rel (%p264) target = $region40
        $region39: #{tpu_custom_call.1} parent=31 // pred_region
          %267 = dma.done %s260, 128
        $region40: #{tpu_custom_call.1} parent=31 // pred_fallthru
          _
        // Predicated region
        $region41: #{tpu_custom_call.1} parent=31 // pred_check
          %p268 = pneg %p97
        $region42: #{tpu_custom_call.1} parent=31 // pred_check_branch
          %270 = sbr.rel (%p268) target = $region44
        $region43: #{tpu_custom_call.1} parent=31 // pred_region
          %271 = dma.done [#allocation6], 512
        $region44: #{tpu_custom_call.1} parent=31 // pred_fallthru
          _
        %s272 = sand.u32 %s37, 1
        %s273 = scalar_lea.sflag [#allocation3], %s272
        %s274 = sand.u32 %s37, 1
        %s275 = smul.addr %s274, 8
        %s276 = scalar_lea.vmem [#allocation2], %s275
        %p277 = pneg %p50
        %p278 = pneg %p47
        %s279 = sand.u32 %s29, 1
        %s280 = scalar_lea.sflag [#allocation6], %s279
        %s281 = sand.u32 %s63, 1
        %s282 = smul.addr %s281, 8
        %s283 = scalar_lea.vmem [#allocation5], %s282
        %p284 = pneg %p76
        %p285 = pneg %p73
        %p286 = pneg %p97
        %p287 = pneg %p94
        %p288 = pneg %p123
        %p289 = pneg %p120
        %p290 = scmp.lt.s32.totalorder %s29, 1
        %s291 = scalar_select %p290, %s29, 1
        %s292 = smul.addr %s291, 8
        %s293 = scalar_lea.vmem %s3, %s292
        %p294 = pneg %p149
        %p295 = pneg %p146
        %s296 = sand.u32 %s136, 1
        %s297 = scalar_lea.sflag [#allocation4], %s296
        %s298 = sand.u32 %s136, 1
        %s299 = smul.addr %s298, 8
        %s300 = scalar_lea.vmem [#allocation8], %s299
        %p301 = pneg %p175
        %p302 = pneg %p172
        %s303 = sand.u32 %s162, 1
        %s304 = scalar_lea.sflag [#allocation10], %s303
        %s305 = sand.u32 %s162, 1
        %s306 = smul.addr %s305, 64
        %s307 = scalar_lea.vmem [#allocation9], %s306
        %p308 = scmp.lt.s32.totalorder %s29, 1
        %s309 = scalar_select %p308, %s29, 1
        %s310 = smul.addr %s309, 8
        %s311 = scalar_lea.vmem %s3, %s310
        %v312 = vld [vmem:[%s254] sm:$0xff]
        %v313 = vld [vmem:[%s263] sm:$0xff]
        %vm314 = vcmask 261120
        %v315 = vsel %vm314, %v312, -inf
        %316 = vmax.xlane.f32.xlu0 %v315
        %v317 = vpop.xlane.xlu0 %316
        %v318 = vmax.f32 %v317, 0.0
        %v319 = vsub.f32 %v312, %v318
        %v320 = vmul.f32 %v319, 1.442695
        %v321 = vpow.pop %v320
        %v322 = vsel %vm314, %v321, 0.0
        %323 = vadd.xlane.f32.xlu0 %v322
        %v324 = vpop.xlane.xlu0 %323
        %v325 = vsub.f32 0.0, %v318
        %v326 = vmul.f32 %v325, 1.442695
        %v327 = vpow.pop %v326
        %v328 = vadd.f32 %v324, %v327
        %vm329 = vcmask 269312
        %v330 = vsel %vm329, %v313, -inf
        %331 = vmax.xlane.f32.xlu0 %v330
        %v332 = vpop.xlane.xlu0 %331
        %v333 = vlaneseq
        %v334 = vand.u32 %v333, 127
        %vm335 = vcmp.eq.f32.partialorder %v313, %v332
        %v336 = vsel %vm335, %v334, 33
        %v337 = vsel %vm329, %v336, 2147483647
        %v338 = vand.u32 %v337, 65535
        %v339 = vshra.s32 %v337, 16
        %v340 = vcvt.s32.f32 %v338
        %v341 = vcvt.s32.f32 %v339
        %342 = vmin.xlane.f32.xlu0 %v341
        %v343 = vpop.xlane.xlu0 %342
        %vm344 = vcmp.eq.f32.partialorder %v341, %v343
        %v345 = vsel %vm344, %v340, inf
        %346 = vmin.xlane.f32.xlu0 %v345
        %v347 = vpop.xlane.xlu0 %346
        %v348 = vcvt.f32.s32 %v347
        %v349 = vcvt.f32.s32 %v343
        %v350 = vshll.u32 %v349, 16
        %v351 = vadd.s32 %v350, %v348
        %vm352 = vcmp.eq.s32.totalorder %v334, %v351
        %v353 = vsel %vm352, %v312, 0.0
        %v354 = vsel %vm314, %v353, 0.0
        %355 = vadd.xlane.f32.xlu0 %v354
        %v356 = vpop.xlane.xlu0 %355
        %v357 = vlog2.pop %v328
        %v358 = vmul.f32 %v357, 0.6931472
        %v359 = vadd.f32 %v318, %v358
        %v360 = vsub.f32 %v359, %v356
        %v361 = vrcp.pop %v328
        %v362 = vmul.f32 %v328, %v361
        %v363 = vsub.f32 2.0, %v362
        %v364 = vmul.f32 %v361, %v363
        %v365 = vmul.f32 %v328, %v364
        %v366 = vsub.f32 2.0, %v365
        %v367 = vmul.f32 %v364, %v366
        %v368 = vmul.f32 %v321, %v367
        %v369 = vsel %vm352, 1, 0
        %v370 = vcvt.s32.f32 %v369
        %vm371 = vcmask 7168
        %372 = vst.msk [vmem:[%s311] sm:$0xff] %vm371, %v360
        %v373 = vsub.f32 %v368, %v370
        %374 = vst.msk [vmem:[%s300] sm:$0xff] %vm314, %v373
        %v375 = vlaneseq
        %v376 = vshrl.u32 %v375, 7
        %v377 = vsub.s32 0, %v376
        %v378 = vrot.slane %v368, %v377
        %380 = vbcast.lane.b32.xlu0 %v378, 256
        %v381 = vpop.permute.xlu0 %380
        %s383 = sor.u32 256, 8
        %384 = vbcast.lane.b32.xlu0 %v378, %s383
        %v385 = vpop.permute.xlu0 %384
        %s387 = sor.u32 256, 16
        %388 = vbcast.lane.b32.xlu0 %v378, %s387
        %v389 = vpop.permute.xlu0 %388
        %s391 = sor.u32 256, 24
        %392 = vbcast.lane.b32.xlu0 %v378, %s391
        %v393 = vpop.permute.xlu0 %392
        %v394 = vlaneseq
        %v395 = vshrl.u32 %v394, 7
        %v396 = vsub.s32 1, %v395
        %v397 = vrot.slane %v368, %v396
        %399 = vbcast.lane.b32.xlu0 %v397, 256
        %v400 = vpop.permute.xlu0 %399
        %s402 = sor.u32 256, 8
        %403 = vbcast.lane.b32.xlu0 %v397, %s402
        %v404 = vpop.permute.xlu0 %403
        %s406 = sor.u32 256, 16
        %407 = vbcast.lane.b32.xlu0 %v397, %s406
        %v408 = vpop.permute.xlu0 %407
        %s410 = sor.u32 256, 24
        %411 = vbcast.lane.b32.xlu0 %v397, %s410
        %v412 = vpop.permute.xlu0 %411
        %v413 = vlaneseq
        %v414 = vshrl.u32 %v413, 7
        %v415 = vsub.s32 2, %v414
        %v416 = vrot.slane %v368, %v415
        %418 = vbcast.lane.b32.xlu0 %v416, 256
        %v419 = vpop.permute.xlu0 %418
        %s421 = sor.u32 256, 8
        %422 = vbcast.lane.b32.xlu0 %v416, %s421
        %v423 = vpop.permute.xlu0 %422
        %s425 = sor.u32 256, 16
        %426 = vbcast.lane.b32.xlu0 %v416, %s425
        %v427 = vpop.permute.xlu0 %426
        %s429 = sor.u32 256, 24
        %430 = vbcast.lane.b32.xlu0 %v416, %s429
        %v431 = vpop.permute.xlu0 %430
        %v432 = vlaneseq
        %v433 = vshrl.u32 %v432, 7
        %v434 = vsub.s32 3, %v433
        %v435 = vrot.slane %v368, %v434
        %437 = vbcast.lane.b32.xlu0 %v435, 256
        %v438 = vpop.permute.xlu0 %437
        %s440 = sor.u32 256, 8
        %441 = vbcast.lane.b32.xlu0 %v435, %s440
        %v442 = vpop.permute.xlu0 %441
        %s444 = sor.u32 256, 16
        %445 = vbcast.lane.b32.xlu0 %v435, %s444
        %v446 = vpop.permute.xlu0 %445
        %s448 = sor.u32 256, 24
        %449 = vbcast.lane.b32.xlu0 %v435, %s448
        %v450 = vpop.permute.xlu0 %449
        %v451 = vlaneseq
        %v452 = vshrl.u32 %v451, 7
        %v453 = vsub.s32 4, %v452
        %v454 = vrot.slane %v368, %v453
        %456 = vbcast.lane.b32.xlu0 %v454, 256
        %v457 = vpop.permute.xlu0 %456
        %s459 = sor.u32 256, 8
        %460 = vbcast.lane.b32.xlu0 %v454, %s459
        %v461 = vpop.permute.xlu0 %460
        %s463 = sor.u32 256, 16
        %464 = vbcast.lane.b32.xlu0 %v454, %s463
        %v465 = vpop.permute.xlu0 %464
        %s467 = sor.u32 256, 24
        %468 = vbcast.lane.b32.xlu0 %v454, %s467
        %v469 = vpop.permute.xlu0 %468
        %v470 = vlaneseq
        %v471 = vshrl.u32 %v470, 7
        %v472 = vsub.s32 5, %v471
        %v473 = vrot.slane %v368, %v472
        %475 = vbcast.lane.b32.xlu0 %v473, 256
        %v476 = vpop.permute.xlu0 %475
        %s478 = sor.u32 256, 8
        %479 = vbcast.lane.b32.xlu0 %v473, %s478
        %v480 = vpop.permute.xlu0 %479
        %s482 = sor.u32 256, 16
        %483 = vbcast.lane.b32.xlu0 %v473, %s482
        %v484 = vpop.permute.xlu0 %483
        %s486 = sor.u32 256, 24
        %487 = vbcast.lane.b32.xlu0 %v473, %s486
        %v488 = vpop.permute.xlu0 %487
        %v489 = vlaneseq
        %v490 = vshrl.u32 %v489, 7
        %v491 = vsub.s32 6, %v490
        %v492 = vrot.slane %v368, %v491
        %494 = vbcast.lane.b32.xlu0 %v492, 256
        %v495 = vpop.permute.xlu0 %494
        %s497 = sor.u32 256, 8
        %498 = vbcast.lane.b32.xlu0 %v492, %s497
        %v499 = vpop.permute.xlu0 %498
        %s501 = sor.u32 256, 16
        %502 = vbcast.lane.b32.xlu0 %v492, %s501
        %v503 = vpop.permute.xlu0 %502
        %s505 = sor.u32 256, 24
        %506 = vbcast.lane.b32.xlu0 %v492, %s505
        %v507 = vpop.permute.xlu0 %506
        %v508 = vlaneseq
        %v509 = vshrl.u32 %v508, 7
        %v510 = vsub.s32 7, %v509
        %v511 = vrot.slane %v368, %v510
        %513 = vbcast.lane.b32.xlu0 %v511, 256
        %v514 = vpop.permute.xlu0 %513
        %s516 = sor.u32 256, 8
        %517 = vbcast.lane.b32.xlu0 %v511, %s516
        %v518 = vpop.permute.xlu0 %517
        %s520 = sor.u32 256, 16
        %521 = vbcast.lane.b32.xlu0 %v511, %s520
        %v522 = vpop.permute.xlu0 %521
        %s524 = sor.u32 256, 24
        %525 = vbcast.lane.b32.xlu0 %v511, %s524
        %v526 = vpop.permute.xlu0 %525
        %v527 = vld [vmem:[#allocation7] sm:$0xff]
        %v528 = vld [vmem:[#allocation7 + $0x8] sm:$0xff]
        %v529 = vld [vmem:[#allocation7 + $0x10] sm:$0xff]
        %v530 = vld [vmem:[#allocation7 + $0x18] sm:$0xff]
        %v532 = vcombine.high %v368, %v368
        %v534 = vunpack.c.l.s4 1966171168
        %v535 = vunpack.c.0.s8 %v534
        %v536 = vlaneseq
        %v537 = vshrl.u32 %v536, 7
        %v538 = vsub.s32 %v535, %v537
        %v539 = vrot.slane %v368, %v538
        %v541 = vunpack.c.l.s4 1966171168
        %v542 = vunpack.c.0.s8 %v541
        %v543 = vlaneseq
        %v544 = vshrl.u32 %v543, 7
        %v545 = vsub.s32 %v542, %v544
        %v546 = vrot.slane %v532, %v545
        %v547 = vcombine.high %v539, %v539
        %v548 = vcombine.high %v546, %v546
        %v550 = vunpack.c.l.s4 1966171168
        %v551 = vunpack.c.0.s8 %v550
        %v552 = vlaneseq
        %v553 = vshrl.u32 %v552, 7
        %v554 = vsub.s32 %v551, %v553
        %v555 = vrot.slane %v539, %v554
        %v557 = vunpack.c.l.s4 1966171168
        %v558 = vunpack.c.0.s8 %v557
        %v559 = vlaneseq
        %v560 = vshrl.u32 %v559, 7
        %v561 = vsub.s32 %v558, %v560
        %v562 = vrot.slane %v546, %v561
        %v564 = vunpack.c.l.s4 1966171168
        %v565 = vunpack.c.0.s8 %v564
        %v566 = vlaneseq
        %v567 = vshrl.u32 %v566, 7
        %v568 = vsub.s32 %v565, %v567
        %v569 = vrot.slane %v547, %v568
        %v571 = vunpack.c.l.s4 1966171168
        %v572 = vunpack.c.0.s8 %v571
        %v573 = vlaneseq
        %v574 = vshrl.u32 %v573, 7
        %v575 = vsub.s32 %v572, %v574
        %v576 = vrot.slane %v548, %v575
        %v577 = vcombine.high %v555, %v555
        %v578 = vcombine.high %v562, %v562
        %v579 = vcombine.high %v569, %v569
        %v580 = vcombine.high %v576, %v576
        %v581 = vlaneseq
        %v582 = vshrl.u32 %v581, 7
        %v583 = vsub.s32 0, %v582
        %v584 = vrot.slane %v555, %v583
        %v585 = vlaneseq
        %v586 = vshrl.u32 %v585, 7
        %v587 = vsub.s32 0, %v586
        %v588 = vrot.slane %v569, %v587
        %v589 = vlaneseq
        %v590 = vshrl.u32 %v589, 7
        %v591 = vsub.s32 0, %v590
        %v592 = vrot.slane %v577, %v591
        %v593 = vlaneseq
        %v594 = vshrl.u32 %v593, 7
        %v595 = vsub.s32 0, %v594
        %v596 = vrot.slane %v579, %v595
        %v597 = vlaneseq
        %v598 = vshrl.u32 %v597, 7
        %v599 = vsub.s32 0, %v598
        %v600 = vrot.slane %v562, %v599
        %v601 = vlaneseq
        %v602 = vshrl.u32 %v601, 7
        %v603 = vsub.s32 0, %v602
        %v604 = vrot.slane %v576, %v603
        %v605 = vlaneseq
        %v606 = vshrl.u32 %v605, 7
        %v607 = vsub.s32 0, %v606
        %v608 = vrot.slane %v578, %v607
        %v609 = vlaneseq
        %v610 = vshrl.u32 %v609, 7
        %v611 = vsub.s32 0, %v610
        %v612 = vrot.slane %v580, %v611
        %v621 = vsub.f32 %v527, %v584
        %v622 = vsub.f32 %v528, %v584
        %v623 = vsub.f32 %v529, %v584
        %v624 = vsub.f32 %v530, %v584
        %v625 = vsub.f32 %v527, %v588
        %v626 = vsub.f32 %v528, %v588
        %v627 = vsub.f32 %v529, %v588
        %v628 = vsub.f32 %v530, %v588
        %v629 = vsub.f32 %v527, %v592
        %v630 = vsub.f32 %v528, %v592
        %v631 = vsub.f32 %v529, %v592
        %v632 = vsub.f32 %v530, %v592
        %v633 = vsub.f32 %v527, %v596
        %v634 = vsub.f32 %v528, %v596
        %v635 = vsub.f32 %v529, %v596
        %v636 = vsub.f32 %v530, %v596
        %v637 = vsub.f32 %v527, %v600
        %v638 = vsub.f32 %v528, %v600
        %v639 = vsub.f32 %v529, %v600
        %v640 = vsub.f32 %v530, %v600
        %v641 = vsub.f32 %v527, %v604
        %v642 = vsub.f32 %v528, %v604
        %v643 = vsub.f32 %v529, %v604
        %v644 = vsub.f32 %v530, %v604
        %v645 = vsub.f32 %v527, %v608
        %v646 = vsub.f32 %v528, %v608
        %v647 = vsub.f32 %v529, %v608
        %v648 = vsub.f32 %v530, %v608
        %v649 = vsub.f32 %v527, %v612
        %v650 = vsub.f32 %v528, %v612
        %v651 = vsub.f32 %v529, %v612
        %v652 = vsub.f32 %v530, %v612
        %v653 = vmul.f32 %v381, %v621
        %v654 = vmul.f32 %v385, %v622
        %v655 = vmul.f32 %v389, %v623
        %v656 = vmul.f32 %v393, %v624
        %v657 = vmul.f32 %v400, %v625
        %v658 = vmul.f32 %v404, %v626
        %v659 = vmul.f32 %v408, %v627
        %v660 = vmul.f32 %v412, %v628
        %v661 = vmul.f32 %v419, %v629
        %v662 = vmul.f32 %v423, %v630
        %v663 = vmul.f32 %v427, %v631
        %v664 = vmul.f32 %v431, %v632
        %v665 = vmul.f32 %v438, %v633
        %v666 = vmul.f32 %v442, %v634
        %v667 = vmul.f32 %v446, %v635
        %v668 = vmul.f32 %v450, %v636
        %v669 = vmul.f32 %v457, %v637
        %v670 = vmul.f32 %v461, %v638
        %v671 = vmul.f32 %v465, %v639
        %v672 = vmul.f32 %v469, %v640
        %v673 = vmul.f32 %v476, %v641
        %v674 = vmul.f32 %v480, %v642
        %v675 = vmul.f32 %v484, %v643
        %v676 = vmul.f32 %v488, %v644
        %v677 = vmul.f32 %v495, %v645
        %v678 = vmul.f32 %v499, %v646
        %v679 = vmul.f32 %v503, %v647
        %v680 = vmul.f32 %v507, %v648
        %v681 = vmul.f32 %v514, %v649
        %v682 = vmul.f32 %v518, %v650
        %v683 = vmul.f32 %v522, %v651
        %v684 = vmul.f32 %v526, %v652
        %v685 = vcombine.low %v653, %v661
        %v686 = vcombine.high %v653, %v661
        %v688 = vunpack.c.l.s4 1983009808
        %v689 = vunpack.c.0.s8 %v688
        %v690 = vlaneseq
        %v691 = vshrl.u32 %v690, 7
        %v692 = vsub.s32 %v689, %v691
        %v693 = vrot.slane %v685, %v692
        %v695 = vunpack.c.l.s4 1983009808
        %v696 = vunpack.c.0.s8 %v695
        %v697 = vlaneseq
        %v698 = vshrl.u32 %v697, 7
        %v699 = vsub.s32 %v696, %v698
        %v700 = vrot.slane %v686, %v699
        %v701 = vcombine.low %v657, %v665
        %v702 = vcombine.high %v657, %v665
        %v704 = vunpack.c.l.s4 1983009808
        %v705 = vunpack.c.0.s8 %v704
        %v706 = vlaneseq
        %v707 = vshrl.u32 %v706, 7
        %v708 = vsub.s32 %v705, %v707
        %v709 = vrot.slane %v701, %v708
        %v711 = vunpack.c.l.s4 1983009808
        %v712 = vunpack.c.0.s8 %v711
        %v713 = vlaneseq
        %v714 = vshrl.u32 %v713, 7
        %v715 = vsub.s32 %v712, %v714
        %v716 = vrot.slane %v702, %v715
        %v717 = vcombine.low %v669, %v677
        %v718 = vcombine.high %v669, %v677
        %v720 = vunpack.c.l.s4 1983009808
        %v721 = vunpack.c.0.s8 %v720
        %v722 = vlaneseq
        %v723 = vshrl.u32 %v722, 7
        %v724 = vsub.s32 %v721, %v723
        %v725 = vrot.slane %v717, %v724
        %v727 = vunpack.c.l.s4 1983009808
        %v728 = vunpack.c.0.s8 %v727
        %v729 = vlaneseq
        %v730 = vshrl.u32 %v729, 7
        %v731 = vsub.s32 %v728, %v730
        %v732 = vrot.slane %v718, %v731
        %v733 = vcombine.low %v673, %v681
        %v734 = vcombine.high %v673, %v681
        %v736 = vunpack.c.l.s4 1983009808
        %v737 = vunpack.c.0.s8 %v736
        %v738 = vlaneseq
        %v739 = vshrl.u32 %v738, 7
        %v740 = vsub.s32 %v737, %v739
        %v741 = vrot.slane %v733, %v740
        %v743 = vunpack.c.l.s4 1983009808
        %v744 = vunpack.c.0.s8 %v743
        %v745 = vlaneseq
        %v746 = vshrl.u32 %v745, 7
        %v747 = vsub.s32 %v744, %v746
        %v748 = vrot.slane %v734, %v747
        %v749 = vcombine.low %v693, %v709
        %v750 = vcombine.high %v693, %v709
        %v752 = vunpack.c.l.s4 1934713408
        %v753 = vunpack.c.0.s8 %v752
        %v754 = vlaneseq
        %v755 = vshrl.u32 %v754, 7
        %v756 = vsub.s32 %v753, %v755
        %v757 = vrot.slane %v749, %v756
        %v759 = vunpack.c.l.s4 1934713408
        %v760 = vunpack.c.0.s8 %v759
        %v761 = vlaneseq
        %v762 = vshrl.u32 %v761, 7
        %v763 = vsub.s32 %v760, %v762
        %v764 = vrot.slane %v750, %v763
        %v765 = vcombine.low %v700, %v716
        %v766 = vcombine.high %v700, %v716
        %v768 = vunpack.c.l.s4 1934713408
        %v769 = vunpack.c.0.s8 %v768
        %v770 = vlaneseq
        %v771 = vshrl.u32 %v770, 7
        %v772 = vsub.s32 %v769, %v771
        %v773 = vrot.slane %v765, %v772
        %v775 = vunpack.c.l.s4 1934713408
        %v776 = vunpack.c.0.s8 %v775
        %v777 = vlaneseq
        %v778 = vshrl.u32 %v777, 7
        %v779 = vsub.s32 %v776, %v778
        %v780 = vrot.slane %v766, %v779
        %v781 = vcombine.low %v725, %v741
        %v782 = vcombine.high %v725, %v741
        %v784 = vunpack.c.l.s4 1934713408
        %v785 = vunpack.c.0.s8 %v784
        %v786 = vlaneseq
        %v787 = vshrl.u32 %v786, 7
        %v788 = vsub.s32 %v785, %v787
        %v789 = vrot.slane %v781, %v788
        %v791 = vunpack.c.l.s4 1934713408
        %v792 = vunpack.c.0.s8 %v791
        %v793 = vlaneseq
        %v794 = vshrl.u32 %v793, 7
        %v795 = vsub.s32 %v792, %v794
        %v796 = vrot.slane %v782, %v795
        %v797 = vcombine.low %v732, %v748
        %v798 = vcombine.high %v732, %v748
        %v800 = vunpack.c.l.s4 1934713408
        %v801 = vunpack.c.0.s8 %v800
        %v802 = vlaneseq
        %v803 = vshrl.u32 %v802, 7
        %v804 = vsub.s32 %v801, %v803
        %v805 = vrot.slane %v797, %v804
        %v807 = vunpack.c.l.s4 1934713408
        %v808 = vunpack.c.0.s8 %v807
        %v809 = vlaneseq
        %v810 = vshrl.u32 %v809, 7
        %v811 = vsub.s32 %v808, %v810
        %v812 = vrot.slane %v798, %v811
        %v813 = vcombine.low %v757, %v789
        %v814 = vcombine.high %v757, %v789
        %v815 = vcombine.low %v764, %v796
        %v816 = vcombine.high %v764, %v796
        %v817 = vcombine.low %v773, %v805
        %v818 = vcombine.high %v773, %v805
        %v819 = vcombine.low %v780, %v812
        %v820 = vcombine.high %v780, %v812
        %v821 = vcombine.low %v654, %v662
        %v822 = vcombine.high %v654, %v662
        %v824 = vunpack.c.l.s4 1983009808
        %v825 = vunpack.c.0.s8 %v824
        %v826 = vlaneseq
        %v827 = vshrl.u32 %v826, 7
        %v828 = vsub.s32 %v825, %v827
        %v829 = vrot.slane %v821, %v828
        %v831 = vunpack.c.l.s4 1983009808
        %v832 = vunpack.c.0.s8 %v831
        %v833 = vlaneseq
        %v834 = vshrl.u32 %v833, 7
        %v835 = vsub.s32 %v832, %v834
        %v836 = vrot.slane %v822, %v835
        %v837 = vcombine.low %v658, %v666
        %v838 = vcombine.high %v658, %v666
        %v840 = vunpack.c.l.s4 1983009808
        %v841 = vunpack.c.0.s8 %v840
        %v842 = vlaneseq
        %v843 = vshrl.u32 %v842, 7
        %v844 = vsub.s32 %v841, %v843
        %v845 = vrot.slane %v837, %v844
        %v847 = vunpack.c.l.s4 1983009808
        %v848 = vunpack.c.0.s8 %v847
        %v849 = vlaneseq
        %v850 = vshrl.u32 %v849, 7
        %v851 = vsub.s32 %v848, %v850
        %v852 = vrot.slane %v838, %v851
        %v853 = vcombine.low %v670, %v678
        %v854 = vcombine.high %v670, %v678
        %v856 = vunpack.c.l.s4 1983009808
        %v857 = vunpack.c.0.s8 %v856
        %v858 = vlaneseq
        %v859 = vshrl.u32 %v858, 7
        %v860 = vsub.s32 %v857, %v859
        %v861 = vrot.slane %v853, %v860
        %v863 = vunpack.c.l.s4 1983009808
        %v864 = vunpack.c.0.s8 %v863
        %v865 = vlaneseq
        %v866 = vshrl.u32 %v865, 7
        %v867 = vsub.s32 %v864, %v866
        %v868 = vrot.slane %v854, %v867
        %v869 = vcombine.low %v674, %v682
        %v870 = vcombine.high %v674, %v682
        %v872 = vunpack.c.l.s4 1983009808
        %v873 = vunpack.c.0.s8 %v872
        %v874 = vlaneseq
        %v875 = vshrl.u32 %v874, 7
        %v876 = vsub.s32 %v873, %v875
        %v877 = vrot.slane %v869, %v876
        %v879 = vunpack.c.l.s4 1983009808
        %v880 = vunpack.c.0.s8 %v879
        %v881 = vlaneseq
        %v882 = vshrl.u32 %v881, 7
        %v883 = vsub.s32 %v880, %v882
        %v884 = vrot.slane %v870, %v883
        %v885 = vcombine.low %v829, %v845
        %v886 = vcombine.high %v829, %v845
        %v888 = vunpack.c.l.s4 1934713408
        %v889 = vunpack.c.0.s8 %v888
        %v890 = vlaneseq
        %v891 = vshrl.u32 %v890, 7
        %v892 = vsub.s32 %v889, %v891
        %v893 = vrot.slane %v885, %v892
        %v895 = vunpack.c.l.s4 1934713408
        %v896 = vunpack.c.0.s8 %v895
        %v897 = vlaneseq
        %v898 = vshrl.u32 %v897, 7
        %v899 = vsub.s32 %v896, %v898
        %v900 = vrot.slane %v886, %v899
        %v901 = vcombine.low %v836, %v852
        %v902 = vcombine.high %v836, %v852
        %v904 = vunpack.c.l.s4 1934713408
        %v905 = vunpack.c.0.s8 %v904
        %v906 = vlaneseq
        %v907 = vshrl.u32 %v906, 7
        %v908 = vsub.s32 %v905, %v907
        %v909 = vrot.slane %v901, %v908
        %v911 = vunpack.c.l.s4 1934713408
        %v912 = vunpack.c.0.s8 %v911
        %v913 = vlaneseq
        %v914 = vshrl.u32 %v913, 7
        %v915 = vsub.s32 %v912, %v914
        %v916 = vrot.slane %v902, %v915
        %v917 = vcombine.low %v861, %v877
        %v918 = vcombine.high %v861, %v877
        %v920 = vunpack.c.l.s4 1934713408
        %v921 = vunpack.c.0.s8 %v920
        %v922 = vlaneseq
        %v923 = vshrl.u32 %v922, 7
        %v924 = vsub.s32 %v921, %v923
        %v925 = vrot.slane %v917, %v924
        %v927 = vunpack.c.l.s4 1934713408
        %v928 = vunpack.c.0.s8 %v927
        %v929 = vlaneseq
        %v930 = vshrl.u32 %v929, 7
        %v931 = vsub.s32 %v928, %v930
        %v932 = vrot.slane %v918, %v931
        %v933 = vcombine.low %v868, %v884
        %v934 = vcombine.high %v868, %v884
        %v936 = vunpack.c.l.s4 1934713408
        %v937 = vunpack.c.0.s8 %v936
        %v938 = vlaneseq
        %v939 = vshrl.u32 %v938, 7
        %v940 = vsub.s32 %v937, %v939
        %v941 = vrot.slane %v933, %v940
        %v943 = vunpack.c.l.s4 1934713408
        %v944 = vunpack.c.0.s8 %v943
        %v945 = vlaneseq
        %v946 = vshrl.u32 %v945, 7
        %v947 = vsub.s32 %v944, %v946
        %v948 = vrot.slane %v934, %v947
        %v949 = vcombine.low %v893, %v925
        %v950 = vcombine.high %v893, %v925
        %v951 = vcombine.low %v900, %v932
        %v952 = vcombine.high %v900, %v932
        %v953 = vcombine.low %v909, %v941
        %v954 = vcombine.high %v909, %v941
        %v955 = vcombine.low %v916, %v948
        %v956 = vcombine.high %v916, %v948
        %v957 = vcombine.low %v655, %v663
        %v958 = vcombine.high %v655, %v663
        %v960 = vunpack.c.l.s4 1983009808
        %v961 = vunpack.c.0.s8 %v960
        %v962 = vlaneseq
        %v963 = vshrl.u32 %v962, 7
        %v964 = vsub.s32 %v961, %v963
        %v965 = vrot.slane %v957, %v964
        %v967 = vunpack.c.l.s4 1983009808
        %v968 = vunpack.c.0.s8 %v967
        %v969 = vlaneseq
        %v970 = vshrl.u32 %v969, 7
        %v971 = vsub.s32 %v968, %v970
        %v972 = vrot.slane %v958, %v971
        %v973 = vcombine.low %v659, %v667
        %v974 = vcombine.high %v659, %v667
        %v976 = vunpack.c.l.s4 1983009808
        %v977 = vunpack.c.0.s8 %v976
        %v978 = vlaneseq
        %v979 = vshrl.u32 %v978, 7
        %v980 = vsub.s32 %v977, %v979
        %v981 = vrot.slane %v973, %v980
        %v983 = vunpack.c.l.s4 1983009808
        %v984 = vunpack.c.0.s8 %v983
        %v985 = vlaneseq
        %v986 = vshrl.u32 %v985, 7
        %v987 = vsub.s32 %v984, %v986
        %v988 = vrot.slane %v974, %v987
        %v989 = vcombine.low %v671, %v679
        %v990 = vcombine.high %v671, %v679
        %v992 = vunpack.c.l.s4 1983009808
        %v993 = vunpack.c.0.s8 %v992
        %v994 = vlaneseq
        %v995 = vshrl.u32 %v994, 7
        %v996 = vsub.s32 %v993, %v995
        %v997 = vrot.slane %v989, %v996
        %v999 = vunpack.c.l.s4 1983009808
        %v1000 = vunpack.c.0.s8 %v999
        %v1001 = vlaneseq
        %v1002 = vshrl.u32 %v1001, 7
        %v1003 = vsub.s32 %v1000, %v1002
        %v1004 = vrot.slane %v990, %v1003
        %v1005 = vcombine.low %v675, %v683
        %v1006 = vcombine.high %v675, %v683
        %v1008 = vunpack.c.l.s4 1983009808
        %v1009 = vunpack.c.0.s8 %v1008
        %v1010 = vlaneseq
        %v1011 = vshrl.u32 %v1010, 7
        %v1012 = vsub.s32 %v1009, %v1011
        %v1013 = vrot.slane %v1005, %v1012
        %v1015 = vunpack.c.l.s4 1983009808
        %v1016 = vunpack.c.0.s8 %v1015
        %v1017 = vlaneseq
        %v1018 = vshrl.u32 %v1017, 7
        %v1019 = vsub.s32 %v1016, %v1018
        %v1020 = vrot.slane %v1006, %v1019
        %v1021 = vcombine.low %v965, %v981
        %v1022 = vcombine.high %v965, %v981
        %v1024 = vunpack.c.l.s4 1934713408
        %v1025 = vunpack.c.0.s8 %v1024
        %v1026 = vlaneseq
        %v1027 = vshrl.u32 %v1026, 7
        %v1028 = vsub.s32 %v1025, %v1027
        %v1029 = vrot.slane %v1021, %v1028
        %v1031 = vunpack.c.l.s4 1934713408
        %v1032 = vunpack.c.0.s8 %v1031
        %v1033 = vlaneseq
        %v1034 = vshrl.u32 %v1033, 7
        %v1035 = vsub.s32 %v1032, %v1034
        %v1036 = vrot.slane %v1022, %v1035
        %v1037 = vcombine.low %v972, %v988
        %v1038 = vcombine.high %v972, %v988
        %v1040 = vunpack.c.l.s4 1934713408
        %v1041 = vunpack.c.0.s8 %v1040
        %v1042 = vlaneseq
        %v1043 = vshrl.u32 %v1042, 7
        %v1044 = vsub.s32 %v1041, %v1043
        %v1045 = vrot.slane %v1037, %v1044
        %v1047 = vunpack.c.l.s4 1934713408
        %v1048 = vunpack.c.0.s8 %v1047
        %v1049 = vlaneseq
        %v1050 = vshrl.u32 %v1049, 7
        %v1051 = vsub.s32 %v1048, %v1050
        %v1052 = vrot.slane %v1038, %v1051
        %v1053 = vcombine.low %v997, %v1013
        %v1054 = vcombine.high %v997, %v1013
        %v1056 = vunpack.c.l.s4 1934713408
        %v1057 = vunpack.c.0.s8 %v1056
        %v1058 = vlaneseq
        %v1059 = vshrl.u32 %v1058, 7
        %v1060 = vsub.s32 %v1057, %v1059
        %v1061 = vrot.slane %v1053, %v1060
        %v1063 = vunpack.c.l.s4 1934713408
        %v1064 = vunpack.c.0.s8 %v1063
        %v1065 = vlaneseq
        %v1066 = vshrl.u32 %v1065, 7
        %v1067 = vsub.s32 %v1064, %v1066
        %v1068 = vrot.slane %v1054, %v1067
        %v1069 = vcombine.low %v1004, %v1020
        %v1070 = vcombine.high %v1004, %v1020
        %v1072 = vunpack.c.l.s4 1934713408
        %v1073 = vunpack.c.0.s8 %v1072
        %v1074 = vlaneseq
        %v1075 = vshrl.u32 %v1074, 7
        %v1076 = vsub.s32 %v1073, %v1075
        %v1077 = vrot.slane %v1069, %v1076
        %v1079 = vunpack.c.l.s4 1934713408
        %v1080 = vunpack.c.0.s8 %v1079
        %v1081 = vlaneseq
        %v1082 = vshrl.u32 %v1081, 7
        %v1083 = vsub.s32 %v1080, %v1082
        %v1084 = vrot.slane %v1070, %v1083
        %v1085 = vcombine.low %v1029, %v1061
        %v1086 = vcombine.high %v1029, %v1061
        %v1087 = vcombine.low %v1036, %v1068
        %v1088 = vcombine.high %v1036, %v1068
        %v1089 = vcombine.low %v1045, %v1077
        %v1090 = vcombine.high %v1045, %v1077
        %v1091 = vcombine.low %v1052, %v1084
        %v1092 = vcombine.high %v1052, %v1084
        %v1093 = vcombine.low %v656, %v664
        %v1094 = vcombine.high %v656, %v664
        %v1096 = vunpack.c.l.s4 1983009808
        %v1097 = vunpack.c.0.s8 %v1096
        %v1098 = vlaneseq
        %v1099 = vshrl.u32 %v1098, 7
        %v1100 = vsub.s32 %v1097, %v1099
        %v1101 = vrot.slane %v1093, %v1100
        %v1103 = vunpack.c.l.s4 1983009808
        %v1104 = vunpack.c.0.s8 %v1103
        %v1105 = vlaneseq
        %v1106 = vshrl.u32 %v1105, 7
        %v1107 = vsub.s32 %v1104, %v1106
        %v1108 = vrot.slane %v1094, %v1107
        %v1109 = vcombine.low %v660, %v668
        %v1110 = vcombine.high %v660, %v668
        %v1112 = vunpack.c.l.s4 1983009808
        %v1113 = vunpack.c.0.s8 %v1112
        %v1114 = vlaneseq
        %v1115 = vshrl.u32 %v1114, 7
        %v1116 = vsub.s32 %v1113, %v1115
        %v1117 = vrot.slane %v1109, %v1116
        %v1119 = vunpack.c.l.s4 1983009808
        %v1120 = vunpack.c.0.s8 %v1119
        %v1121 = vlaneseq
        %v1122 = vshrl.u32 %v1121, 7
        %v1123 = vsub.s32 %v1120, %v1122
        %v1124 = vrot.slane %v1110, %v1123
        %v1125 = vcombine.low %v672, %v680
        %v1126 = vcombine.high %v672, %v680
        %v1128 = vunpack.c.l.s4 1983009808
        %v1129 = vunpack.c.0.s8 %v1128
        %v1130 = vlaneseq
        %v1131 = vshrl.u32 %v1130, 7
        %v1132 = vsub.s32 %v1129, %v1131
        %v1133 = vrot.slane %v1125, %v1132
        %v1135 = vunpack.c.l.s4 1983009808
        %v1136 = vunpack.c.0.s8 %v1135
        %v1137 = vlaneseq
        %v1138 = vshrl.u32 %v1137, 7
        %v1139 = vsub.s32 %v1136, %v1138
        %v1140 = vrot.slane %v1126, %v1139
        %v1141 = vcombine.low %v676, %v684
        %v1142 = vcombine.high %v676, %v684
        %v1144 = vunpack.c.l.s4 1983009808
        %v1145 = vunpack.c.0.s8 %v1144
        %v1146 = vlaneseq
        %v1147 = vshrl.u32 %v1146, 7
        %v1148 = vsub.s32 %v1145, %v1147
        %v1149 = vrot.slane %v1141, %v1148
        %v1151 = vunpack.c.l.s4 1983009808
        %v1152 = vunpack.c.0.s8 %v1151
        %v1153 = vlaneseq
        %v1154 = vshrl.u32 %v1153, 7
        %v1155 = vsub.s32 %v1152, %v1154
        %v1156 = vrot.slane %v1142, %v1155
        %v1157 = vcombine.low %v1101, %v1117
        %v1158 = vcombine.high %v1101, %v1117
        %v1160 = vunpack.c.l.s4 1934713408
        %v1161 = vunpack.c.0.s8 %v1160
        %v1162 = vlaneseq
        %v1163 = vshrl.u32 %v1162, 7
        %v1164 = vsub.s32 %v1161, %v1163
        %v1165 = vrot.slane %v1157, %v1164
        %v1167 = vunpack.c.l.s4 1934713408
        %v1168 = vunpack.c.0.s8 %v1167
        %v1169 = vlaneseq
        %v1170 = vshrl.u32 %v1169, 7
        %v1171 = vsub.s32 %v1168, %v1170
        %v1172 = vrot.slane %v1158, %v1171
        %v1173 = vcombine.low %v1108, %v1124
        %v1174 = vcombine.high %v1108, %v1124
        %v1176 = vunpack.c.l.s4 1934713408
        %v1177 = vunpack.c.0.s8 %v1176
        %v1178 = vlaneseq
        %v1179 = vshrl.u32 %v1178, 7
        %v1180 = vsub.s32 %v1177, %v1179
        %v1181 = vrot.slane %v1173, %v1180
        %v1183 = vunpack.c.l.s4 1934713408
        %v1184 = vunpack.c.0.s8 %v1183
        %v1185 = vlaneseq
        %v1186 = vshrl.u32 %v1185, 7
        %v1187 = vsub.s32 %v1184, %v1186
        %v1188 = vrot.slane %v1174, %v1187
        %v1189 = vcombine.low %v1133, %v1149
        %v1190 = vcombine.high %v1133, %v1149
        %v1192 = vunpack.c.l.s4 1934713408
        %v1193 = vunpack.c.0.s8 %v1192
        %v1194 = vlaneseq
        %v1195 = vshrl.u32 %v1194, 7
        %v1196 = vsub.s32 %v1193, %v1195
        %v1197 = vrot.slane %v1189, %v1196
        %v1199 = vunpack.c.l.s4 1934713408
        %v1200 = vunpack.c.0.s8 %v1199
        %v1201 = vlaneseq
        %v1202 = vshrl.u32 %v1201, 7
        %v1203 = vsub.s32 %v1200, %v1202
        %v1204 = vrot.slane %v1190, %v1203
        %v1205 = vcombine.low %v1140, %v1156
        %v1206 = vcombine.high %v1140, %v1156
        %v1208 = vunpack.c.l.s4 1934713408
        %v1209 = vunpack.c.0.s8 %v1208
        %v1210 = vlaneseq
        %v1211 = vshrl.u32 %v1210, 7
        %v1212 = vsub.s32 %v1209, %v1211
        %v1213 = vrot.slane %v1205, %v1212
        %v1215 = vunpack.c.l.s4 1934713408
        %v1216 = vunpack.c.0.s8 %v1215
        %v1217 = vlaneseq
        %v1218 = vshrl.u32 %v1217, 7
        %v1219 = vsub.s32 %v1216, %v1218
        %v1220 = vrot.slane %v1206, %v1219
        %v1221 = vcombine.low %v1165, %v1197
        %v1222 = vcombine.high %v1165, %v1197
        %v1223 = vcombine.low %v1172, %v1204
        %v1224 = vcombine.high %v1172, %v1204
        %v1225 = vcombine.low %v1181, %v1213
        %v1226 = vcombine.high %v1181, %v1213
        %v1227 = vcombine.low %v1188, %v1220
        %v1228 = vcombine.high %v1188, %v1220
        %1230 = vrot.lane.b32.xlu0 %v814, 32
        %v1231 = vpop.permute.xlu0 %1230
        %1234 = vrot.lane.b32.xlu0 %v815, 64
        %v1235 = vpop.permute.xlu0 %1234
        %1238 = vrot.lane.b32.xlu0 %v816, 96
        %v1239 = vpop.permute.xlu0 %1238
        %1242 = vrot.lane.b32.xlu0 %v818, 32
        %v1243 = vpop.permute.xlu0 %1242
        %1246 = vrot.lane.b32.xlu0 %v819, 64
        %v1247 = vpop.permute.xlu0 %1246
        %1250 = vrot.lane.b32.xlu0 %v820, 96
        %v1251 = vpop.permute.xlu0 %1250
        %1254 = vrot.lane.b32.xlu0 %v950, 32
        %v1255 = vpop.permute.xlu0 %1254
        %1258 = vrot.lane.b32.xlu0 %v951, 64
        %v1259 = vpop.permute.xlu0 %1258
        %1262 = vrot.lane.b32.xlu0 %v952, 96
        %v1263 = vpop.permute.xlu0 %1262
        %1266 = vrot.lane.b32.xlu0 %v954, 32
        %v1267 = vpop.permute.xlu0 %1266
        %1270 = vrot.lane.b32.xlu0 %v955, 64
        %v1271 = vpop.permute.xlu0 %1270
        %1274 = vrot.lane.b32.xlu0 %v956, 96
        %v1275 = vpop.permute.xlu0 %1274
        %1278 = vrot.lane.b32.xlu0 %v1086, 32
        %v1279 = vpop.permute.xlu0 %1278
        %1282 = vrot.lane.b32.xlu0 %v1087, 64
        %v1283 = vpop.permute.xlu0 %1282
        %1286 = vrot.lane.b32.xlu0 %v1088, 96
        %v1287 = vpop.permute.xlu0 %1286
        %1290 = vrot.lane.b32.xlu0 %v1090, 32
        %v1291 = vpop.permute.xlu0 %1290
        %1294 = vrot.lane.b32.xlu0 %v1091, 64
        %v1295 = vpop.permute.xlu0 %1294
        %1298 = vrot.lane.b32.xlu0 %v1092, 96
        %v1299 = vpop.permute.xlu0 %1298
        %1302 = vrot.lane.b32.xlu0 %v1222, 32
        %v1303 = vpop.permute.xlu0 %1302
        %1306 = vrot.lane.b32.xlu0 %v1223, 64
        %v1307 = vpop.permute.xlu0 %1306
        %1310 = vrot.lane.b32.xlu0 %v1224, 96
        %v1311 = vpop.permute.xlu0 %1310
        %1314 = vrot.lane.b32.xlu0 %v1226, 32
        %v1315 = vpop.permute.xlu0 %1314
        %1318 = vrot.lane.b32.xlu0 %v1227, 64
        %v1319 = vpop.permute.xlu0 %1318
        %1322 = vrot.lane.b32.xlu0 %v1228, 96
        %v1323 = vpop.permute.xlu0 %1322
        %v1325 = vsel %vm314, %v813, %v1231
        %vm1326 = vcmask 523264
        %v1327 = vsel %vm1326, %v1325, %v1235
        %vm1328 = vcmask 785408
        %v1329 = vsel %vm1328, %v1327, %v1239
        %v1330 = vsel %vm314, %v817, %v1243
        %v1331 = vsel %vm1326, %v1330, %v1247
        %v1332 = vsel %vm1328, %v1331, %v1251
        %v1333 = vsel %vm314, %v949, %v1255
        %v1334 = vsel %vm1326, %v1333, %v1259
        %v1335 = vsel %vm1328, %v1334, %v1263
        %v1336 = vsel %vm314, %v953, %v1267
        %v1337 = vsel %vm1326, %v1336, %v1271
        %v1338 = vsel %vm1328, %v1337, %v1275
        %v1339 = vsel %vm314, %v1085, %v1279
        %v1340 = vsel %vm1326, %v1339, %v1283
        %v1341 = vsel %vm1328, %v1340, %v1287
        %v1342 = vsel %vm314, %v1089, %v1291
        %v1343 = vsel %vm1326, %v1342, %v1295
        %v1344 = vsel %vm1328, %v1343, %v1299
        %v1345 = vsel %vm314, %v1221, %v1303
        %v1346 = vsel %vm1326, %v1345, %v1307
        %v1347 = vsel %vm1328, %v1346, %v1311
        %v1348 = vsel %vm314, %v1225, %v1315
        %v1349 = vsel %vm1326, %v1348, %v1319
        %v1350 = vsel %vm1328, %v1349, %v1323
        %1351 = vst [vmem:[%s307] sm:$0xff] %v1329
        %1352 = vst [vmem:[%s307 + $0x8] sm:$0xff] %v1332
        %1353 = vst [vmem:[%s307 + $0x10] sm:$0xff] %v1335
        %1354 = vst [vmem:[%s307 + $0x18] sm:$0xff] %v1338
        %1355 = vst [vmem:[%s307 + $0x20] sm:$0xff] %v1341
        %1356 = vst [vmem:[%s307 + $0x28] sm:$0xff] %v1344
        %1357 = vst [vmem:[%s307 + $0x30] sm:$0xff] %v1347
        %1358 = vst [vmem:[%s307 + $0x38] sm:$0xff] %v1350
        %p1359 = scmp.lt.s32.totalorder %s29, 1
        %s1360 = scalar_select %p1359, %s29, 1
        %s1361 = smul.addr %s1360, 8
        %s1362 = scalar_lea.vmem %s3, %s1361
        %s1363 = sand.u32 %s136, 1
        %s1364 = scalar_lea.sflag [#allocation4], %s1363
        %s1365 = sand.u32 %s136, 1
        %s1366 = smul.addr %s1365, 8
        %s1367 = scalar_lea.vmem [#allocation8], %s1366
        %s1368 = sand.u32 %s162, 1
        %s1369 = scalar_lea.sflag [#allocation10], %s1368
        %s1370 = sand.u32 %s162, 1
        %s1371 = smul.addr %s1370, 64
        %s1372 = scalar_lea.vmem [#allocation9], %s1371
        // Predicated region
        $region45: #{tpu_custom_call.1} parent=31 // pred_check
          %p1373 = pneg %p120
        $region46: #{tpu_custom_call.1} parent=31 // pred_check_branch
          %1375 = sbr.rel (%p1373) target = $region48
        $region47: #{tpu_custom_call.1} parent=31 // pred_region
          _
        $region48: #{tpu_custom_call.1} parent=31 // pred_fallthru
          _
        // Predicated region
        $region49: #{tpu_custom_call.1} parent=31 // pred_check
          %p1376 = pneg %p146
        $region50: #{tpu_custom_call.1} parent=31 // pred_check_branch
          %1378 = sbr.rel (%p1376) target = $region52
        $region51: #{tpu_custom_call.1} parent=31 // pred_region
          %s1380 = ssub.s32 128, 128
          %1381 = vsyncadd %s1364, %s1380
          %s1382 = smul.addr %s29, 128
          %s1383 = scalar_lea.hbm %s4, %s1382
          %s1385 = sshll.u32 %s1367, 4
          %s1386 = int_to_ptr.vmem [resolvable:$true] %s1385
          %1388 = dma.vmem_to_hbm [thread:$0]  %s1386, 128, %s1383, %s1364
        $region52: #{tpu_custom_call.1} parent=31 // pred_fallthru
          _
        // Predicated region
        $region53: #{tpu_custom_call.1} parent=31 // pred_check
          %p1389 = pneg %p172
        $region54: #{tpu_custom_call.1} parent=31 // pred_check_branch
          %1391 = sbr.rel (%p1389) target = $region56
        $region55: #{tpu_custom_call.1} parent=31 // pred_region
          %s1393 = ssub.s32 1024, 1024
          %1394 = vsyncadd %s1369, %s1393
          %s1395 = smul.addr %s29, 8
          %s1396 = smul.addr %s1395, 128
          %s1397 = scalar_lea.hbm %s5, %s1396
          %s1399 = sshll.u32 %s1372, 4
          %s1400 = int_to_ptr.vmem [resolvable:$true] %s1399
          %1402 = dma.vmem_to_hbm [thread:$0]  %s1400, 1024, %s1397, %s1369
        $region56: #{tpu_custom_call.1} parent=31 // pred_fallthru
          _
      $region32: #{tpu_custom_call.1} parent=5 // pred_fallthru
        _
      %p1403 = scmp.le.s32.totalorder 2, %s24
      // Predicated region
      $region57: #{tpu_custom_call.1} parent=5 // pred_check
        %p1404 = pneg %p1403
      $region58: #{tpu_custom_call.1} parent=5 // pred_check_branch
        %1406 = sbr.rel (%p1404) target = $region60
      $region59: #{tpu_custom_call.1} parent=5 // pred_region
        %s1407 = ssub.s32 %s24, 2
        // Predicated region
        $region61: #{tpu_custom_call.1} parent=59 // pred_check
          %p1408 = pneg %p126
        $region62: #{tpu_custom_call.1} parent=59 // pred_check_branch
          %1410 = sbr.rel (%p1408) target = $region64
        $region63: #{tpu_custom_call.1} parent=59 // pred_region
          %p1411 = scmp.lt.s32.totalorder %s30, 1
          %s1412 = scalar_select %p1411, %s30, 1
          %s1413 = smul.addr %s1412, 8
          %s1414 = scalar_lea.vmem %s3, %s1413
        $region64: #{tpu_custom_call.1} parent=59 // pred_fallthru
          _
        // Predicated region
        $region65: #{tpu_custom_call.1} parent=59 // pred_check
          %p1415 = pneg %p152
        $region66: #{tpu_custom_call.1} parent=59 // pred_check_branch
          %1417 = sbr.rel (%p1415) target = $region68
        $region67: #{tpu_custom_call.1} parent=59 // pred_region
          %s1418 = sand.u32 %s137, 1
          %s1419 = scalar_lea.sflag [#allocation4], %s1418
          %s1420 = sand.u32 %s137, 1
          %s1421 = smul.addr %s1420, 8
          %s1422 = scalar_lea.vmem [#allocation8], %s1421
          %1423 = dma.done %s1419, 128
        $region68: #{tpu_custom_call.1} parent=59 // pred_fallthru
          _
        // Predicated region
        $region69: #{tpu_custom_call.1} parent=59 // pred_check
          %p1424 = pneg %p178
        $region70: #{tpu_custom_call.1} parent=59 // pred_check_branch
          %1426 = sbr.rel (%p1424) target = $region72
        $region71: #{tpu_custom_call.1} parent=59 // pred_region
          %s1427 = sand.u32 %s163, 1
          %s1428 = scalar_lea.sflag [#allocation10], %s1427
          %s1429 = sand.u32 %s163, 1
          %s1430 = smul.addr %s1429, 64
          %s1431 = scalar_lea.vmem [#allocation9], %s1430
          %1432 = dma.done %s1428, 1024
        $region72: #{tpu_custom_call.1} parent=59 // pred_fallthru
          _
      $region60: #{tpu_custom_call.1} parent=5 // pred_fallthru
        _
    $region6: #{tpu_custom_call.1} parent=1 // loop_footer
      %s28 = sadd.s32 1, %s24
    $region7: #{tpu_custom_call.1} parent=1 // loop_footer_branch
      %23 = sbr.rel target = $region3
    $region8: #{tpu_custom_call.1} parent=1 // loop_exit
      _
    %1433 = vsyncpa [#allocation3], 1
    %s1434 = scalar_lea.sflag [#allocation3], 1
    %1435 = vsyncpa %s1434, 1
    %1436 = vsyncpa [#allocation6], 1
    %s1437 = scalar_lea.sflag [#allocation6], 1
    %1438 = vsyncpa %s1437, 1
    %1439 = vsyncpa [#allocation4], 1
    %s1440 = scalar_lea.sflag [#allocation4], 1
    %1441 = vsyncpa %s1440, 1
    %1442 = vsyncpa [#allocation10], 1
    %s1443 = scalar_lea.sflag [#allocation10], 1
    %1444 = vsyncpa %s1443, 1

</llo_original>
